<compile_context>
chip_gen: v5e
topology: v5e:2x2
jax: 0.10.0
libtpu: 0.0.40
codegen_flags: <defaults>
</compile_context>

<pallas_src>
import jax
import jax.numpy as jnp
from jax.experimental import pallas as pl
from jax.experimental.pallas import tpu as pltpu


def _fused_pre_model_kernel(x_ref, w_ref, b_ref, o_ref):
    # x_ref: (B, H)  f32  -- shared representation, resident (same block every step)
    # w_ref: (H, TN) bf16 -- one tile-major weight slab (contiguous in HBM)
    # b_ref: (1, TN) f32  -- fused bias tile
    # o_ref: (B, TN) f32  -- lane-dense output tile
    x16 = x_ref[...].astype(jnp.bfloat16)
    y = jnp.dot(x16, w_ref[...], preferred_element_type=jnp.float32)
    o_ref[...] = (y + b_ref[...]).astype(o_ref.dtype)


def _vmem_budget_bytes():
    """Generation-aware scoped-VMEM budget (v7x: 64 MiB phys, v5e/v6e: 128 MiB)."""
    try:
        info = pltpu.get_tpu_info()
        cap = int(getattr(info, "vmem_capacity_bytes", 64 * 1024 * 1024))
    except Exception:
        cap = 64 * 1024 * 1024  # conservative fallback (fits every generation)
    # Leave ~24 MiB headroom for Mosaic internals; never ask for more than 112 MiB.
    return max(24 * 1024 * 1024, min(cap - 24 * 1024 * 1024, 112 * 1024 * 1024))


def _pick_tile_n(n_pad, hidden, batch, w_bytes, budget_bytes):
    """Largest 128-multiple divisor of n_pad whose double-buffered working set
    fits the VMEM budget, capped at n_pad//2 (when possible) so the grid has
    >= 2 tiles and v7x can shard them across both TensorCores."""
    assert n_pad % 128 == 0
    max_tn = n_pad if n_pad < 256 else n_pad // 2
    best = 128
    tn = 128
    while tn <= max_tn:
        if n_pad % tn == 0:
            vmem = (2 * hidden * tn * w_bytes   # double-buffered weight tile
                    + 2 * batch * tn * 4        # double-buffered output tile
                    + 2 * tn * 4                # double-buffered bias tile
                    + 2 * batch * hidden * 4)   # resident x (2 buffers)
            if vmem <= budget_bytes:
                best = tn
        tn += 128
    return best


def init_params(key, predict_step, hidden, inputdim):
    """Deterministic init mimicking nn.Linear default U(-1/sqrt(hidden), 1/sqrt(hidden)).

    Weights are stored pre-fused as (hidden, predict_step*inputdim) in bf16:
    column block [i*inputdim:(i+1)*inputdim] plays the role of Wk[i].weight.T.
    Bias stays f32 (added in f32 inside the kernel)."""
    kw, kb = jax.random.split(key)
    bound = float(hidden) ** -0.5
    w_fused = jax.random.uniform(
        kw, (hidden, predict_step * inputdim), jnp.float32, -bound, bound
    ).astype(jnp.bfloat16)
    b_fused = jax.random.uniform(
        kb, (predict_step * inputdim,), jnp.float32, -bound, bound
    )
    return w_fused, b_fused


def pack_params(w_fused, b_fused, batchsize):
    """One-time re-layout (done at init, zero cost in forward):
       * pad the fused N axis with zero columns up to a multiple of 128,
       * block the bf16 weights tile-major as (nt, H, tn) so each tile DMA is
         one contiguous HBM slab,
       * keep the f32 bias as a padded (1, N_pad) row."""
    H, N = w_fused.shape
    n_pad = -(-N // 128) * 128
    tn = _pick_tile_n(n_pad, H, batchsize, w_fused.dtype.itemsize, _vmem_budget_bytes())
    nt = n_pad // tn
    w_pad = jnp.pad(w_fused, ((0, 0), (0, n_pad - N)))
    w_blocked = w_pad.reshape(H, nt, tn).transpose(1, 0, 2)         # (nt, H, tn)
    b_pad = jnp.pad(b_fused.astype(jnp.float32), (0, n_pad - N)).reshape(1, n_pad)
    return w_blocked, b_pad


def pre_model_forward(input_rep, w_blocked, b_pad, predict_step, inputdim):
    """input_rep: (B, H) f32
       w_blocked: (nt, H, tn) bf16 tile-major fused weights (from pack_params)
       b_pad:     (1, nt*tn)  f32 fused bias (padded)
       returns:   (B, P, D) f32  (== torch pre_res[:, i] = Wk[i](input_rep))"""
    B, H = input_rep.shape
    nt, Hw, tn = w_blocked.shape
    assert Hw == H
    n_pad = nt * tn
    N = predict_step * inputdim
    assert b_pad.shape == (1, n_pad) and N <= n_pad

    w_bytes = w_blocked.dtype.itemsize
    cost = pl.CostEstimate(
        flops=2 * B * H * n_pad,
        transcendentals=0,
        bytes_accessed=(H * n_pad * w_bytes          # weights (dominant)
                        + B * H * input_rep.dtype.itemsize
                        + n_pad * 4                  # bias
                        + B * n_pad * 4),            # output
    )

    out_flat = pl.pallas_call(
        _fused_pre_model_kernel,
        out_shape=jax.ShapeDtypeStruct((B, n_pad), jnp.float32),
        grid_spec=pltpu.PrefetchScalarGridSpec(
            num_scalar_prefetch=0,
            grid=(nt,),
            in_specs=[
                pl.BlockSpec((B, H), lambda j: (0, 0)),            # x: resident
                pl.BlockSpec((None, H, tn), lambda j: (j, 0, 0)),  # contiguous weight tile
                pl.BlockSpec((1, tn), lambda j: (0, j)),           # bias tile
            ],
            out_specs=pl.BlockSpec((B, tn), lambda j: (0, j)),
        ),
        compiler_params=pltpu.CompilerParams(
            dimension_semantics=("parallel",),        # shards N-tiles across v7x TCs
            vmem_limit_bytes=_vmem_budget_bytes(),    # generation-aware scoped VMEM
        ),
        cost_estimate=cost,
    )(input_rep, w_blocked, b_pad)

    # Drop the zero-padded columns, then (B, P*D) -> (B, P, D): free reshape.
    return out_flat[:, :N].reshape(B, predict_step, inputdim)


if __name__ == "__main__":
    batchsize = 2
    predict_step = 4
    hidden = 32
    inputdim = 16

    key = jax.random.PRNGKey(0)
    k_x, k_p = jax.random.split(key)

    input_rep = jax.random.normal(k_x, (batchsize, hidden), jnp.float32)
    w_fused, b_fused = init_params(k_p, predict_step, hidden, inputdim)
    w_blocked, b_pad = pack_params(w_fused, b_fused, batchsize)

    out = pre_model_forward(input_rep, w_blocked, b_pad, predict_step, inputdim)
    out = jax.block_until_ready(out)

    # Reference: the original per-head loop of Linears in f32, using the same
    # bf16-rounded operands the kernel sees (weights stored bf16, x cast to
    # bf16 for the MXU; accumulation is f32 in both).
    x_ref32 = input_rep.astype(jnp.bfloat16).astype(jnp.float32)
    ref_heads = []
    for i in range(predict_step):
        w_i = w_fused[:, i * inputdim:(i + 1) * inputdim].astype(jnp.float32)
        b_i = b_fused[i * inputdim:(i + 1) * inputdim]
        ref_heads.append(x_ref32 @ w_i + b_i)
    ref = jnp.stack(ref_heads, axis=1)                      # (B, P, D)

    assert out.shape == (batchsize, predict_step, inputdim)
    assert jnp.allclose(out, ref, atol=1e-3, rtol=1e-3)

    print("KERNEL_OK")
</pallas_src>

<mosaic_0001>
module attributes {stable_mosaic.version = 11 : i64} {
  func.func @_fused_pre_model_kernel(%arg0: i32, %arg1: memref<2x32xf32, #tpu.memory_space<vmem>>, %arg2: memref<1x32x128xbf16, #tpu.memory_space<vmem>>, %arg3: memref<1x128xf32, #tpu.memory_space<vmem>>, %arg4: memref<2x128xf32, #tpu.memory_space<vmem>>) attributes {dimension_semantics = [#tpu.dimension_semantics<parallel>], iteration_bounds = array<i64: 1>, scalar_prefetch = 0 : i64, scratch_operands = 0 : i64, tpu.core_type = #tpu.core_type<tc>, window_params = [{pipeline_mode = #tpu.pipeline_mode<synchronous>, transform_indices = @transform_0, window_bounds = array<i64: 2, 32>}, {transform_indices = @transform_1, window_bounds = array<i64: 1, 32, 128>}, {transform_indices = @transform_2, window_bounds = array<i64: 1, 128>}, {transform_indices = @transform_3, window_bounds = array<i64: 2, 128>}]} {
    %c0 = arith.constant 0 : index
    %c0_0 = arith.constant 0 : index
    %0 = vector.load %arg1[%c0, %c0_0] : memref<2x32xf32, #tpu.memory_space<vmem>>, vector<2x32xf32>
    %1 = arith.truncf %0 : vector<2x32xf32> to vector<2x32xbf16>
    %c0_1 = arith.constant 0 : index
    %c0_2 = arith.constant 0 : index
    %c0_3 = arith.constant 0 : index
    %2 = vector.load %arg2[%c0_1, %c0_2, %c0_3] : memref<1x32x128xbf16, #tpu.memory_space<vmem>>, vector<1x32x128xbf16>
    %3 = vector.shape_cast %2 : vector<1x32x128xbf16> to vector<32x128xbf16>
    %cst = arith.constant dense<0.000000e+00> : vector<2x128xf32>
    %4 = tpu.matmul %1, %3, %cst {dimension_numbers = #tpu.dot_dimension_numbers<[1], [0], [0], [1], [0, 0, 1, 1], [], []>} : vector<2x32xbf16>, vector<32x128xbf16>, vector<2x128xf32> -> vector<2x128xf32>
    %c0_4 = arith.constant 0 : index
    %c0_5 = arith.constant 0 : index
    %5 = vector.load %arg3[%c0_4, %c0_5] : memref<1x128xf32, #tpu.memory_space<vmem>>, vector<1x128xf32>
    %6 = vector.broadcast %5 : vector<1x128xf32> to vector<2x128xf32>
    %7 = arith.addf %4, %6 : vector<2x128xf32>
    %c0_6 = arith.constant 0 : index
    %c0_7 = arith.constant 0 : index
    %8 = vector.load %arg4[%c0_6, %c0_7] : memref<2x128xf32, #tpu.memory_space<vmem>>, vector<2x128xf32>
    tpu.vector_store %arg4[%c0_6, %c0_7], %7 {strides = array<i32>} : memref<2x128xf32, #tpu.memory_space<vmem>>, vector<2x128xf32>,
    return
  }
  func.func @transform_0(%arg0: i32) -> (i32, i32) {
    %c0_i32 = arith.constant 0 : i32
    %c0_i32_0 = arith.constant 0 : i32
    %c0_i32_1 = arith.constant 0 : i32
    return %c0_i32, %c0_i32_0 : i32, i32
  }
  func.func @transform_1(%arg0: i32) -> (i32, i32, i32) {
    %c0_i32 = arith.constant 0 : i32
    %c0_i32_0 = arith.constant 0 : i32
    %c0_i32_1 = arith.constant 0 : i32
    return %arg0, %c0_i32, %c0_i32_0 : i32, i32, i32
  }
  func.func @transform_2(%arg0: i32) -> (i32, i32) {
    %c0_i32 = arith.constant 0 : i32
    %c0_i32_0 = arith.constant 0 : i32
    return %c0_i32, %arg0 : i32, i32
  }
  func.func @transform_3(%arg0: i32) -> (i32, i32) {
    %c0_i32 = arith.constant 0 : i32
    %c0_i32_0 = arith.constant 0 : i32
    return %c0_i32, %arg0 : i32, i32
  }
}

</mosaic_0001>

<llo_original>
// kernel: tpu_custom_call.1
$region0: #{tpu_custom_call.1}
  #allocation0 [shape = 'u32[]', space=smem, size = 0x4, offset = 0x4, fixed_abs, tag = 'smem constant byte address 0x4 - core index']
  #allocation1 [shape = 'u32[72,128]{1,0:T(1,128)}', space=vmem, size = 0x9000, scoped, tag = 'internal scratch']
  %s0 = inlined_call_operand.hbm [shape: f32[2,32], index: 0, kind: input, shape index: {}]
  %s1 = inlined_call_operand.hbm [shape: bf16[1,32,128], index: 1, kind: input, shape index: {}]
  %s2 = inlined_call_operand.vmem [shape: f32[1,128], index: 2, kind: input, shape index: {}]
  %s3 = inlined_call_operand.hbm [shape: f32[2,128], index: 3, kind: output, shape index: {}]
  %s4 = sld [smem:[#allocation0]]
  $region30: #{tpu_custom_call.1} parent=0
    _
  %s6 = ssub.s32 1, %s4
  %s7 = scalar_select 0, %s6, %s4
  $region1: #{tpu_custom_call.1} parent=0
    #allocation2 [shape = 'u8[1024]{0}', space=vmem, size = 0x400, scoped, tag = 'input window, operand 0, single buffered']
    #allocation3 [shape = 's32[1]{0}', space=sflag, size = 0x4, scoped, tag = 'scoped memory for tpu_custom_call.1']
    #allocation4 [shape = 's32[1]{0}', space=sflag, size = 0x4, scoped, tag = 'scoped memory for tpu_custom_call.1']
    #allocation5 [shape = 'u8[8192]{0}', space=vmem, size = 0x2000, scoped, tag = 'input window, operand 1, single buffered']
    #allocation6 [shape = 's32[1]{0}', space=sflag, size = 0x4, scoped, tag = 'scoped memory for tpu_custom_call.1']
    #allocation7 [shape = 'u8[1024]{0}', space=vmem, size = 0x400, scoped, tag = 'output window, operand 0, single buffered']
    %8 = vsyncpa [#allocation3], 0
    %9 = vsyncpa [#allocation6], 0
    %10 = vsyncpa [#allocation4], 0
    // Predicated region
    $region2: #{tpu_custom_call.1} parent=1 // pred_check
      _
    $region3: #{tpu_custom_call.1} parent=1 // pred_check_branch
      %12 = sbr.rel (0) target = $region5
    $region4: #{tpu_custom_call.1} parent=1 // pred_region
      %14 = vsyncadd [#allocation3], 0
      %s16 = sshll.u32 %s0, 4
      %s17 = int_to_ptr.hbm [resolvable:$true] %s16
      %s18 = sshll.u32 [#allocation2], 4
      %s19 = int_to_ptr.vmem [resolvable:$true] %s18
      %21 = dma.hbm_to_vmem [thread:$0]  %s17, 32, %s19, [#allocation3]
    $region5: #{tpu_custom_call.1} parent=1 // pred_fallthru
      _
    // Predicated region
    $region6: #{tpu_custom_call.1} parent=1 // pred_check
      _
    $region7: #{tpu_custom_call.1} parent=1 // pred_check_branch
      %23 = sbr.rel (0) target = $region9
    $region8: #{tpu_custom_call.1} parent=1 // pred_region
      %25 = vsyncadd [#allocation6], 0
      %s26 = sshll.u32 %s1, 4
      %s27 = int_to_ptr.hbm [resolvable:$true] %s26
      %s28 = sshll.u32 [#allocation5], 4
      %s29 = int_to_ptr.vmem [resolvable:$true] %s28
      %34 = dma.hbm_to_vmem [thread:$0]  %s27, 256, %s29, [#allocation6], 64, 64, 4
    $region9: #{tpu_custom_call.1} parent=1 // pred_fallthru
      _
    // Predicated region
    $region10: #{tpu_custom_call.1} parent=1 // pred_check
      _
    $region11: #{tpu_custom_call.1} parent=1 // pred_check_branch
      %36 = sbr.rel (0) target = $region13
    $region12: #{tpu_custom_call.1} parent=1 // pred_region
      _
    $region13: #{tpu_custom_call.1} parent=1 // pred_fallthru
      _
    // Predicated region
    $region14: #{tpu_custom_call.1} parent=1 // pred_check
      _
    $region15: #{tpu_custom_call.1} parent=1 // pred_check_branch
      %38 = sbr.rel (0) target = $region17
    $region16: #{tpu_custom_call.1} parent=1 // pred_region
      %40 = dma.done [#allocation3], 32
    $region17: #{tpu_custom_call.1} parent=1 // pred_fallthru
      _
    // Predicated region
    $region18: #{tpu_custom_call.1} parent=1 // pred_check
      _
    $region19: #{tpu_custom_call.1} parent=1 // pred_check_branch
      %42 = sbr.rel (0) target = $region21
    $region20: #{tpu_custom_call.1} parent=1 // pred_region
      %44 = dma.done [#allocation6], 256
    $region21: #{tpu_custom_call.1} parent=1 // pred_fallthru
      _
    %v46 = vld [vmem:[#allocation2] sm:$0x3]
    %v47 = vpack.c.bf16 %v46, %v46
    %v48 = vld [vmem:[#allocation5] sm:$0xf]
    %v49 = vld [vmem:[#allocation5 + $0x4] sm:$0xf]
    %v50 = vld [vmem:[#allocation5 + $0x8] sm:$0xf]
    %v51 = vld [vmem:[#allocation5 + $0xc] sm:$0xf]
    %v52 = vld [vmem:[%s2] sm:$0x1]
    %v54 = vperm.slane %v52, 0
    %v60 = vunpack.c.l.b16 %v48
    %v61 = vunpack.c.l.b16 %v49
    %v62 = vunpack.c.l.b16 %v50
    %v63 = vunpack.c.l.b16 %v51
    %v64 = vpack.c.b16 %v61, %v60
    %v65 = vpack.c.b16 %v63, %v62
    %vm68 = vcmask 261120
    %v70 = vsel %vm68, %v47, 0
    %72 = vmatpush.bf16.msra.mxu0 0
    %73 = vmatpush.bf16.msra.mxu0 0
    %74 = vmatpush.bf16.msra.mxu0 0
    %75 = vmatpush.bf16.msra.mxu0 0
    %76 = vmatpush.bf16.msra.mxu0 0
    %77 = vmatpush.bf16.msra.mxu0 0
    %78 = vmatpush.bf16.msra.mxu0 %v65
    %79 = vmatpush.bf16.msra.mxu0 %v64
    %80 = vmatmul.bf16.gmra.mxu0 %v70
    %v81 = vpop.f32.mrf.mxu0
    %v82 = vadd.f32 %v54, %v81
    %v83 = vpop.f32.mrf.mxu0
    %84 = vdwg.mxu0
    %85 = vst [vmem:[#allocation7] sm:$0x3] %v82
    // Predicated region
    $region22: #{tpu_custom_call.1} parent=1 // pred_check
      _
    $region23: #{tpu_custom_call.1} parent=1 // pred_check_branch
      %87 = sbr.rel (0) target = $region25
    $region24: #{tpu_custom_call.1} parent=1 // pred_region
      %89 = vsyncadd [#allocation4], 0
      %s91 = sshll.u32 [#allocation7], 4
      %s92 = int_to_ptr.vmem [resolvable:$true] %s91
      %s93 = sshll.u32 %s3, 4
      %s94 = int_to_ptr.hbm [resolvable:$true] %s93
      %96 = dma.vmem_to_hbm [thread:$0]  %s92, 32, %s94, [#allocation4]
    $region25: #{tpu_custom_call.1} parent=1 // pred_fallthru
      _
    // Predicated region
    $region26: #{tpu_custom_call.1} parent=1 // pred_check
      _
    $region27: #{tpu_custom_call.1} parent=1 // pred_check_branch
      %98 = sbr.rel (0) target = $region29
    $region28: #{tpu_custom_call.1} parent=1 // pred_region
      %100 = dma.done [#allocation4], 32
    $region29: #{tpu_custom_call.1} parent=1 // pred_fallthru
      _
    %101 = vsyncpa [#allocation3], 1
    %102 = vsyncpa [#allocation6], 1
    %103 = vsyncpa [#allocation4], 1

</llo_original>
